<compile_context>
chip_gen: v7x
topology: tpu7x:2x2x1
jax: 0.10.0
libtpu: 0.0.40
codegen_flags: <defaults>
</compile_context>

<pallas_src>
import functools

import jax
import jax.numpy as jnp
from jax.experimental import pallas as pl
from jax.experimental.pallas import tpu as pltpu


def _dice_partial_kernel(x_ref, t_ref, out_ref, *, cls, C, R, S, masked):
    # x_ref:  (1, C, R, 128) logits tile, native dtype, spatially dense minor dims
    # t_ref:  (1, R, 128)    target tile, native int dtype
    # out_ref:(1, 1, 1, 128) int32 partial counts (lanes 0..2)

    # seg = (argmax over channels == cls), torch.argmax first-occurrence
    # tie-break: cls must strictly beat earlier channels, be >= later ones.
    # Pure element-wise compares in native dtype -> VALU only, no XLU reduce,
    # no f32 temporaries, no slices crossing the (8,128) tile boundary.
    if 0 <= cls < C:
        x_cls = x_ref[0, cls]                        # (R, 128)
        seg = None
        for c in range(C):
            if c == cls:
                continue
            xc = x_ref[0, c]
            hit = (x_cls > xc) if c < cls else (x_cls >= xc)
            seg = hit if seg is None else jnp.logical_and(seg, hit)
        if seg is None:                              # C == 1: argmax is always 0
            seg = jnp.ones((R, 128), dtype=jnp.bool_)
    else:                                            # cls outside [0, C): never predicted
        seg = jnp.zeros((R, 128), dtype=jnp.bool_)

    tgt_i = t_ref[0] == cls                          # (R, 128)

    if masked:
        # Only emitted when the spatial extent was 128-padded or the last
        # spatial tile is partial; covers both the row overhang and lane pad.
        row = jax.lax.broadcasted_iota(jnp.int32, (R, 128), 0)
        lane = jax.lax.broadcasted_iota(jnp.int32, (R, 128), 1)
        pix = (pl.program_id(1) * R + row) * 128 + lane
        valid = pix < S
        seg = jnp.logical_and(seg, valid)
        tgt_i = jnp.logical_and(tgt_i, valid)

    inter = jnp.sum(jnp.logical_and(seg, tgt_i).astype(jnp.int32))
    ssum = jnp.sum(seg.astype(jnp.int32))
    tsum = jnp.sum(tgt_i.astype(jnp.int32))

    # Lane-dense 128-wide output row: lanes 0..2 carry the exact int32 counts.
    lane_o = jax.lax.broadcasted_iota(jnp.int32, (1, 1, 1, 128), 3)
    out_ref[...] = jnp.where(
        lane_o == 0, inter,
        jnp.where(lane_o == 1, ssum,
                  jnp.where(lane_o == 2, tsum, 0)))


def dice_score(logits, target, cls):
    """logits: (N, C, H, W) float (any dtype); target: (N, H, W) int; cls: python int."""
    N, C, H, W = logits.shape
    S = H * W
    rows = (S + 127) // 128
    S_pad = rows * 128

    # Reshape to a spatially dense layout (metadata-only when S % 128 == 0;
    # a one-time pad only for awkward spatial extents).
    x = logits.reshape(N, C, S)
    t = target.reshape(N, S)
    if S_pad != S:
        x = jnp.pad(x, ((0, 0), (0, 0), (0, S_pad - S)))
        t = jnp.pad(t, ((0, 0), (0, S_pad - S)))
    x = x.reshape(N, C, rows, 128)
    t = t.reshape(N, rows, 128)

    x_item = x.dtype.itemsize
    t_item = t.dtype.itemsize

    # Generation-aware tile sizing: ~8 MiB of logits per grid step, scaled by
    # the chip's VMEM capacity (v7x: 64 MiB/TC, v5e/v6e: 128 MiB).
    try:
        vmem_cap = int(pltpu.get_tpu_info().vmem_capacity_bytes)
    except Exception:  # conservative fallback if the query is unavailable
        vmem_cap = 128 * 1024 * 1024
    tile_bytes = max(1 << 20, min(8 << 20, vmem_cap // 8))
    row_bytes = C * 128 * x_item
    r_target = max(8, (tile_bytes // row_bytes) // 8 * 8)

    if rows <= r_target:
        R = rows                       # single full-extent spatial block (always legal)
        grid_s = 1
    else:
        R = r_target                   # multiple of 8
        grid_s = (rows + R - 1) // R

    masked = (S_pad != S) or (grid_s * R != rows)

    # Double-buffered inputs + output + in-kernel temporaries, plus headroom,
    # capped well below physical VMEM so pipelining stays double-buffered.
    logits_blk = C * R * 128 * x_item
    target_blk = max(R, 8) * 128 * max(t_item, 4)
    out_blk = 8 * 128 * 4
    working = 2 * (logits_blk + target_blk + out_blk) + 8 * R * 128 * 4
    vmem_limit = int(min(vmem_cap * 3 // 4, max(32 << 20, working + (4 << 20))))

    kernel = functools.partial(
        _dice_partial_kernel, cls=int(cls), C=C, R=R, S=S, masked=masked)

    partials = pl.pallas_call(
        kernel,
        out_shape=jax.ShapeDtypeStruct((N, grid_s, 1, 128), jnp.int32),
        grid_spec=pltpu.PrefetchScalarGridSpec(
            num_scalar_prefetch=0,
            grid=(N, grid_s),
            in_specs=[
                pl.BlockSpec((1, C, R, 128), lambda n, s: (n, 0, s, 0)),
                pl.BlockSpec((1, R, 128), lambda n, s: (n, s, 0)),
            ],
            out_specs=pl.BlockSpec((1, 1, 1, 128), lambda n, s: (n, s, 0, 0)),
        ),
        compiler_params=pltpu.CompilerParams(
            dimension_semantics=("parallel", "parallel"),
            vmem_limit_bytes=vmem_limit,
        ),
    )(x, t)

    # Tiny exact int32 reduction of the per-block partials, then the dice ratio
    # in float32 (same accumulation dtype as the torch reference's .float().sum()).
    totals = jnp.sum(partials, axis=(0, 1, 2))      # (128,)
    inter = totals[0].astype(jnp.float32)
    ssum = totals[1].astype(jnp.float32)
    tsum = totals[2].astype(jnp.float32)
    return 2.0 * inter / (ssum + tsum + 1e-8)


def _dice_score_ref(logits, target, cls):
    seg = jnp.argmax(logits, axis=1)
    seg_i = seg == cls
    tgt_i = target == cls
    inter = jnp.sum(jnp.logical_and(seg_i, tgt_i).astype(jnp.float32))
    s = jnp.sum(seg_i.astype(jnp.float32))
    t = jnp.sum(tgt_i.astype(jnp.float32))
    return 2.0 * inter / (s + t + 1e-8)


if __name__ == "__main__":
    key = jax.random.PRNGKey(0)
    k1, k2 = jax.random.split(key)
    N, C, H, W = 2, 4, 16, 16
    logits = jax.random.normal(k1, (N, C, H, W), dtype=jnp.float32)
    target = jax.random.randint(k2, (N, H, W), 0, C, dtype=jnp.int32)
    cls = 1

    out = dice_score(logits, target, cls)
    jax.block_until_ready(out)

    ref = _dice_score_ref(logits, target, cls)
    assert jnp.allclose(out, ref, atol=1e-6, rtol=1e-6), (out, ref)

    print("KERNEL_OK")
</pallas_src>

<mosaic_0001>
module attributes {stable_mosaic.version = 11 : i64} {
  func.func @_dice_partial_kernel(%arg0: i32, %arg1: i32, %arg2: memref<1x4x2x128xf32, #tpu.memory_space<vmem>>, %arg3: memref<1x2x128xi32, #tpu.memory_space<vmem>>, %arg4: memref<1x1x1x128xi32, #tpu.memory_space<vmem>>) attributes {dimension_semantics = [#tpu.dimension_semantics<parallel>, #tpu.dimension_semantics<parallel>], iteration_bounds = array<i64: 2, 1>, scalar_prefetch = 0 : i64, scratch_operands = 0 : i64, tpu.core_type = #tpu.core_type<tc>, window_params = [{transform_indices = @transform_0, window_bounds = array<i64: 1, 4, 2, 128>}, {transform_indices = @transform_1, window_bounds = array<i64: 1, 2, 128>}, {transform_indices = @transform_2, window_bounds = array<i64: 1, 1, 1, 128>}]} {
    %c0 = arith.constant 0 : index
    %c1 = arith.constant 1 : index
    %c0_0 = arith.constant 0 : index
    %c0_1 = arith.constant 0 : index
    %0 = vector.load %arg2[%c0, %c1, %c0_0, %c0_1] : memref<1x4x2x128xf32, #tpu.memory_space<vmem>>, vector<1x1x2x128xf32>
    %1 = vector.shape_cast %0 : vector<1x1x2x128xf32> to vector<2x128xf32>
    %c0_2 = arith.constant 0 : index
    %c0_3 = arith.constant 0 : index
    %c0_4 = arith.constant 0 : index
    %c0_5 = arith.constant 0 : index
    %2 = vector.load %arg2[%c0_2, %c0_3, %c0_4, %c0_5] : memref<1x4x2x128xf32, #tpu.memory_space<vmem>>, vector<1x1x2x128xf32>
    %3 = vector.shape_cast %2 : vector<1x1x2x128xf32> to vector<2x128xf32>
    %4 = arith.cmpf ogt, %1, %3 : vector<2x128xf32>
    %c0_6 = arith.constant 0 : index
    %c2 = arith.constant 2 : index
    %c0_7 = arith.constant 0 : index
    %c0_8 = arith.constant 0 : index
    %5 = vector.load %arg2[%c0_6, %c2, %c0_7, %c0_8] : memref<1x4x2x128xf32, #tpu.memory_space<vmem>>, vector<1x1x2x128xf32>
    %6 = vector.shape_cast %5 : vector<1x1x2x128xf32> to vector<2x128xf32>
    %7 = arith.cmpf oge, %1, %6 : vector<2x128xf32>
    %8 = arith.andi %4, %7 : vector<2x128xi1>
    %c0_9 = arith.constant 0 : index
    %c3 = arith.constant 3 : index
    %c0_10 = arith.constant 0 : index
    %c0_11 = arith.constant 0 : index
    %9 = vector.load %arg2[%c0_9, %c3, %c0_10, %c0_11] : memref<1x4x2x128xf32, #tpu.memory_space<vmem>>, vector<1x1x2x128xf32>
    %10 = vector.shape_cast %9 : vector<1x1x2x128xf32> to vector<2x128xf32>
    %11 = arith.cmpf oge, %1, %10 : vector<2x128xf32>
    %12 = arith.andi %8, %11 : vector<2x128xi1>
    %c0_12 = arith.constant 0 : index
    %c0_13 = arith.constant 0 : index
    %c0_14 = arith.constant 0 : index
    %13 = vector.load %arg3[%c0_12, %c0_13, %c0_14] : memref<1x2x128xi32, #tpu.memory_space<vmem>>, vector<1x2x128xi32>
    %14 = vector.shape_cast %13 : vector<1x2x128xi32> to vector<2x128xi32>
    %c1_i32 = arith.constant 1 : i32
    %15 = vector.broadcast %c1_i32 : i32 to vector<2x128xi32>
    %16 = arith.cmpi eq, %14, %15 : vector<2x128xi32>
    %17 = arith.andi %12, %16 : vector<2x128xi1>
    %18 = arith.extui %17 : vector<2x128xi1> to vector<2x128xi32>
    %19 = vector.shape_cast %18 : vector<2x128xi32> to vector<1x2x128xi32>
    %cst = arith.constant dense<0> : vector<1xi32>
    %20 = vector.multi_reduction <add>, %19, %cst [1, 2] : vector<1x2x128xi32> to vector<1xi32>
    %21 = vector.shape_cast %20 : vector<1xi32> to vector<1x1x1xi32>
    %22 = vector.extract %21[0, 0, 0] : i32 from vector<1x1x1xi32>
    %23 = arith.extui %12 : vector<2x128xi1> to vector<2x128xi32>
    %24 = vector.shape_cast %23 : vector<2x128xi32> to vector<1x2x128xi32>
    %cst_15 = arith.constant dense<0> : vector<1xi32>
    %25 = vector.multi_reduction <add>, %24, %cst_15 [1, 2] : vector<1x2x128xi32> to vector<1xi32>
    %26 = vector.shape_cast %25 : vector<1xi32> to vector<1x1x1xi32>
    %27 = vector.extract %26[0, 0, 0] : i32 from vector<1x1x1xi32>
    %28 = arith.extui %16 : vector<2x128xi1> to vector<2x128xi32>
    %29 = vector.shape_cast %28 : vector<2x128xi32> to vector<1x2x128xi32>
    %cst_16 = arith.constant dense<0> : vector<1xi32>
    %30 = vector.multi_reduction <add>, %29, %cst_16 [1, 2] : vector<1x2x128xi32> to vector<1xi32>
    %31 = vector.shape_cast %30 : vector<1xi32> to vector<1x1x1xi32>
    %32 = vector.extract %31[0, 0, 0] : i32 from vector<1x1x1xi32>
    %33 = tpu.iota {dimensions = array<i32: 3>} : vector<1x1x1x128xi32>
    %c0_i32 = arith.constant 0 : i32
    %34 = vector.broadcast %c0_i32 : i32 to vector<1x1x1x128xi32>
    %35 = arith.cmpi eq, %33, %34 : vector<1x1x1x128xi32>
    %c1_i32_17 = arith.constant 1 : i32
    %36 = vector.broadcast %c1_i32_17 : i32 to vector<1x1x1x128xi32>
    %37 = arith.cmpi eq, %33, %36 : vector<1x1x1x128xi32>
    %c2_i32 = arith.constant 2 : i32
    %38 = vector.broadcast %c2_i32 : i32 to vector<1x1x1x128xi32>
    %39 = arith.cmpi eq, %33, %38 : vector<1x1x1x128xi32>
    %c0_i32_18 = arith.constant 0 : i32
    %40 = vector.broadcast %32 : i32 to vector<1x1x1x128xi32>
    %41 = vector.broadcast %c0_i32_18 : i32 to vector<1x1x1x128xi32>
    %42 = arith.select %39, %40, %41 : vector<1x1x1x128xi1>, vector<1x1x1x128xi32>
    %43 = vector.broadcast %27 : i32 to vector<1x1x1x128xi32>
    %44 = arith.select %37, %43, %42 : vector<1x1x1x128xi1>, vector<1x1x1x128xi32>
    %45 = vector.broadcast %22 : i32 to vector<1x1x1x128xi32>
    %46 = arith.select %35, %45, %44 : vector<1x1x1x128xi1>, vector<1x1x1x128xi32>
    %c0_19 = arith.constant 0 : index
    %c0_20 = arith.constant 0 : index
    %c0_21 = arith.constant 0 : index
    %c0_22 = arith.constant 0 : index
    %47 = vector.load %arg4[%c0_19, %c0_20, %c0_21, %c0_22] : memref<1x1x1x128xi32, #tpu.memory_space<vmem>>, vector<1x1x1x128xi32>
    tpu.vector_store %arg4[%c0_19, %c0_20, %c0_21, %c0_22], %46 {strides = array<i32>} : memref<1x1x1x128xi32, #tpu.memory_space<vmem>>, vector<1x1x1x128xi32>,
    return
  }
  func.func @transform_0(%arg0: i32, %arg1: i32) -> (i32, i32, i32, i32) {
    %c0_i32 = arith.constant 0 : i32
    %c0_i32_0 = arith.constant 0 : i32
    %c0_i32_1 = arith.constant 0 : i32
    return %arg0, %c0_i32, %arg1, %c0_i32_0 : i32, i32, i32, i32
  }
  func.func @transform_1(%arg0: i32, %arg1: i32) -> (i32, i32, i32) {
    %c0_i32 = arith.constant 0 : i32
    %c0_i32_0 = arith.constant 0 : i32
    return %arg0, %arg1, %c0_i32 : i32, i32, i32
  }
  func.func @transform_2(%arg0: i32, %arg1: i32) -> (i32, i32, i32, i32) {
    %c0_i32 = arith.constant 0 : i32
    %c0_i32_0 = arith.constant 0 : i32
    %c0_i32_1 = arith.constant 0 : i32
    return %arg0, %arg1, %c0_i32, %c0_i32_0 : i32, i32, i32, i32
  }
}

</mosaic_0001>

<llo_original>
// kernel: tpu_custom_call.1
$region0: #{tpu_custom_call.1}
  #allocation0 [shape = 'u32[]', space=smem, size = 0x4, offset = 0x4, fixed_abs, tag = 'smem constant byte address 0x4 - core index']
  #allocation1 [shape = 'u32[144,128]{1,0:T(1,128)}', space=vmem, size = 0x12000, scoped, tag = 'internal scratch']
  %s0 = inlined_call_operand.hbm [shape: f32[2,4,2,128], index: 0, kind: input, shape index: {}]
  %s1 = inlined_call_operand.hbm [shape: s32[2,2,128], index: 1, kind: input, shape index: {}]
  %s2 = inlined_call_operand.hbm [shape: s32[2,1,1,128], index: 2, kind: output, shape index: {}]
  %s3 = sld [smem:[#allocation0]]
  $region49: #{tpu_custom_call.1} parent=0
    _
  %s5 = ssub.s32 1, %s3
  %s6 = scalar_select 0, %s5, %s3
  $region1: #{tpu_custom_call.1} parent=0
    #allocation2 [shape = 'u8[8192]{0}', space=vmem, size = 0x2000, scoped, tag = 'input window, operand 0']
    #allocation3 [shape = 's32[2]{0}', space=sflag, size = 0x8, scoped, tag = 'scoped memory for tpu_custom_call.1']
    #allocation4 [shape = 's32[2]{0}', space=sflag, size = 0x8, scoped, tag = 'scoped memory for tpu_custom_call.1']
    #allocation5 [shape = 'u8[2048]{0}', space=vmem, size = 0x800, scoped, tag = 'input window, operand 1']
    #allocation6 [shape = 's32[2]{0}', space=sflag, size = 0x8, scoped, tag = 'scoped memory for tpu_custom_call.1']
    #allocation7 [shape = 'u8[1024]{0}', space=vmem, size = 0x400, scoped, tag = 'output window, operand 0']
    %7 = vsyncpa [#allocation3], 0
    %s8 = scalar_lea.sflag [#allocation3], 1
    %9 = vsyncpa %s8, 0
    %10 = vsyncpa [#allocation6], 0
    %s11 = scalar_lea.sflag [#allocation6], 1
    %12 = vsyncpa %s11, 0
    %13 = vsyncpa [#allocation4], 0
    %s14 = scalar_lea.sflag [#allocation4], 1
    %15 = vsyncpa %s14, 0
    loop: start=0, step=1, limit=4
    $region2: #{tpu_custom_call.1} parent=1 // loop_pre_header
      _
    $region3: #{tpu_custom_call.1} parent=1 // loop_header
      %s17 = sphi 0, %s21
      %p18 = scmp.ge.s32.totalorder %s17, 4
      %s24 = sphi 0, %s36
      %s25 = sphi 0, %s32
      %s26 = sphi 0, %s24
      %s27 = sphi 0, %s25
      %s28 = sphi 0, %s26
      %s29 = sphi 0, %s27
      %s41 = sphi 0, %s43
      %s44 = sphi 0, %s41
      %s45 = sphi 0, %s44
      %s61 = sphi 0, %s45
      %s69 = sphi 0, %s71
      %s72 = sphi 0, %s69
      %s73 = sphi 0, %s72
      %s89 = sphi 0, %s73
      %s97 = sphi 0, %s99
      %s100 = sphi 0, %s97
      %s101 = sphi 0, %s100
      %s117 = sphi 0, %s101
    $region4: #{tpu_custom_call.1} parent=1 // loop_header_branch
      %20 = sbr.rel (%p18) target = $region8
    $region5: #{tpu_custom_call.1} parent=1 // loop_body
      %s22 = ssub.s32 %s17, 1
      %s23 = ssub.s32 %s17, 2
      %s30 = sadd.s32 1, %s25
      %p31 = scmp.ge.s32.totalorder %s30, 1
      %s32 = scalar_select %p31, 0, %s30
      %s33 = sadd.s32 1, %s24
      %s34 = scalar_select %p31, %s33, %s24
      %p35 = scmp.ge.s32.totalorder %s34, 2
      %s36 = scalar_select %p35, 0, %s34
      %s37 = ssub.s32 %s24, %s36
      %s38 = ssub.s32 %s25, %s32
      %s39 = sor.u32 %s37, %s38
      %p40 = scmp.eq.s32.totalorder %s39, 0
      %s42 = sadd.s32 %s41, 1
      %s43 = scalar_select %p40, %s41, %s42
      %p46 = pneg %p40
      %p47 = scmp.eq.s32.totalorder %s17, 1
      %p48 = por %p46, %p47
      %p49 = scmp.ne.s32.totalorder %s41, %s44
      %p50 = scmp.eq.s32.totalorder %s17, 0
      %p51 = por %p49, %p50
      %p52 = scmp.ne.s32.totalorder %s41, %s44
      %p53 = scmp.eq.s32.totalorder %s22, 1
      %p54 = por %p52, %p53
      %p55 = scmp.ne.s32.totalorder %s44, %s45
      %p56 = scmp.eq.s32.totalorder %s22, 0
      %p57 = por %p55, %p56
      %p58 = scmp.ne.s32.totalorder %s44, %s45
      %p59 = scmp.eq.s32.totalorder %s23, 1
      %p60 = por %p58, %p59
      %p62 = scmp.ne.s32.totalorder %s45, %s61
      %p63 = scmp.eq.s32.totalorder %s23, 0
      %p64 = por %p62, %p63
      %s65 = ssub.s32 %s24, %s36
      %s66 = ssub.s32 %s25, %s32
      %s67 = sor.u32 %s65, %s66
      %p68 = scmp.eq.s32.totalorder %s67, 0
      %s70 = sadd.s32 %s69, 1
      %s71 = scalar_select %p68, %s69, %s70
      %p74 = pneg %p68
      %p75 = scmp.eq.s32.totalorder %s17, 1
      %p76 = por %p74, %p75
      %p77 = scmp.ne.s32.totalorder %s69, %s72
      %p78 = scmp.eq.s32.totalorder %s17, 0
      %p79 = por %p77, %p78
      %p80 = scmp.ne.s32.totalorder %s69, %s72
      %p81 = scmp.eq.s32.totalorder %s22, 1
      %p82 = por %p80, %p81
      %p83 = scmp.ne.s32.totalorder %s72, %s73
      %p84 = scmp.eq.s32.totalorder %s22, 0
      %p85 = por %p83, %p84
      %p86 = scmp.ne.s32.totalorder %s72, %s73
      %p87 = scmp.eq.s32.totalorder %s23, 1
      %p88 = por %p86, %p87
      %p90 = scmp.ne.s32.totalorder %s73, %s89
      %p91 = scmp.eq.s32.totalorder %s23, 0
      %p92 = por %p90, %p91
      %s93 = ssub.s32 %s24, %s36
      %s94 = ssub.s32 %s25, %s32
      %s95 = sor.u32 %s93, %s94
      %p96 = scmp.eq.s32.totalorder %s95, 0
      %s98 = sadd.s32 %s97, 1
      %s99 = scalar_select %p96, %s97, %s98
      %p102 = pneg %p96
      %p103 = scmp.eq.s32.totalorder %s17, 1
      %p104 = por %p102, %p103
      %p105 = scmp.ne.s32.totalorder %s97, %s100
      %p106 = scmp.eq.s32.totalorder %s17, 0
      %p107 = por %p105, %p106
      %p108 = scmp.ne.s32.totalorder %s97, %s100
      %p109 = scmp.eq.s32.totalorder %s22, 1
      %p110 = por %p108, %p109
      %p111 = scmp.ne.s32.totalorder %s100, %s101
      %p112 = scmp.eq.s32.totalorder %s22, 0
      %p113 = por %p111, %p112
      %p114 = scmp.ne.s32.totalorder %s100, %s101
      %p115 = scmp.eq.s32.totalorder %s23, 1
      %p116 = por %p114, %p115
      %p118 = scmp.ne.s32.totalorder %s101, %s117
      %p119 = scmp.eq.s32.totalorder %s23, 0
      %p120 = por %p118, %p119
      %p121 = scmp.le.s32.totalorder 1, %s17
      %p122 = scmp.lt.s32.totalorder %s17, 3
      %p123 = pnand %p121, %p122
      %p124 = pneg %p123
      // Predicated region
      $region9: #{tpu_custom_call.1} parent=5 // pred_check
        _
      $region10: #{tpu_custom_call.1} parent=5 // pred_check_branch
        %126 = sbr.rel (%p123) target = $region12
      $region11: #{tpu_custom_call.1} parent=5 // pred_region
        %s127 = ssub.s32 %s17, 1
      $region12: #{tpu_custom_call.1} parent=5 // pred_fallthru
        _
      %p128 = scmp.lt.s32.totalorder %s17, 2
      // Predicated region
      $region13: #{tpu_custom_call.1} parent=5 // pred_check
        %p129 = pneg %p128
      $region14: #{tpu_custom_call.1} parent=5 // pred_check_branch
        %131 = sbr.rel (%p129) target = $region16
      $region15: #{tpu_custom_call.1} parent=5 // pred_region
        // Predicated region
        $region17: #{tpu_custom_call.1} parent=15 // pred_check
          %p132 = pneg %p51
        $region18: #{tpu_custom_call.1} parent=15 // pred_check_branch
          %134 = sbr.rel (%p132) target = $region20
        $region19: #{tpu_custom_call.1} parent=15 // pred_region
          %s135 = sand.u32 %s41, 1
          %s136 = scalar_lea.sflag [#allocation3], %s135
          %s137 = sand.u32 %s41, 1
          %s138 = smul.addr %s137, 8
          %s139 = scalar_lea.vmem [#allocation2], %s138
          %s141 = ssub.s32 128, 128
          %142 = vsyncadd %s136, %s141
          %s143 = smul.addr %s24, 4
          %s144 = sadd.s32 %s25, %s143
          %s145 = smul.addr %s144, 32
          %s146 = scalar_lea.hbm %s0, %s145
          %s147 = sshll.u32 %s139, 4
          %s148 = int_to_ptr.vmem [resolvable:$true] %s147
          %153 = dma.hbm_to_vmem [thread:$0]  %s146, 128, %s148, %s136, 32, 32, 2
        $region20: #{tpu_custom_call.1} parent=15 // pred_fallthru
          _
        // Predicated region
        $region21: #{tpu_custom_call.1} parent=15 // pred_check
          %p154 = pneg %p79
        $region22: #{tpu_custom_call.1} parent=15 // pred_check_branch
          %156 = sbr.rel (%p154) target = $region24
        $region23: #{tpu_custom_call.1} parent=15 // pred_region
          %s157 = sand.u32 %s69, 1
          %s158 = scalar_lea.sflag [#allocation6], %s157
          %s159 = sand.u32 %s69, 1
          %s160 = smul.addr %s159, 2
          %s161 = scalar_lea.vmem [#allocation5], %s160
          %s163 = ssub.s32 32, 32
          %164 = vsyncadd %s158, %s163
          %s165 = sadd.s32 %s25, %s24
          %s166 = smul.addr %s165, 32
          %s167 = scalar_lea.hbm %s1, %s166
          %s169 = sshll.u32 %s161, 4
          %s170 = int_to_ptr.vmem [resolvable:$true] %s169
          %172 = dma.hbm_to_vmem [thread:$0]  %s167, 32, %s170, %s158
        $region24: #{tpu_custom_call.1} parent=15 // pred_fallthru
          _
      $region16: #{tpu_custom_call.1} parent=5 // pred_fallthru
        _
      %p173 = scmp.le.s32.totalorder 1, %s17
      %p174 = scmp.lt.s32.totalorder %s17, 3
      %p175 = pnand %p173, %p174
      %p176 = pneg %p175
      // Predicated region
      $region25: #{tpu_custom_call.1} parent=5 // pred_check
        _
      $region26: #{tpu_custom_call.1} parent=5 // pred_check_branch
        %178 = sbr.rel (%p175) target = $region28
      $region27: #{tpu_custom_call.1} parent=5 // pred_region
        %s179 = ssub.s32 %s17, 1
        %s180 = sand.u32 %s44, 1
        %s181 = scalar_lea.sflag [#allocation3], %s180
        %s182 = sand.u32 %s44, 1
        %s183 = smul.addr %s182, 8
        %s184 = scalar_lea.vmem [#allocation2], %s183
        // Predicated region
        $region29: #{tpu_custom_call.1} parent=27 // pred_check
          %p185 = pneg %p57
        $region30: #{tpu_custom_call.1} parent=27 // pred_check_branch
          %187 = sbr.rel (%p185) target = $region32
        $region31: #{tpu_custom_call.1} parent=27 // pred_region
          %188 = dma.done %s181, 128
        $region32: #{tpu_custom_call.1} parent=27 // pred_fallthru
          _
        %s189 = sand.u32 %s72, 1
        %s190 = scalar_lea.sflag [#allocation6], %s189
        %s191 = sand.u32 %s72, 1
        %s192 = smul.addr %s191, 2
        %s193 = scalar_lea.vmem [#allocation5], %s192
        // Predicated region
        $region33: #{tpu_custom_call.1} parent=27 // pred_check
          %p194 = pneg %p85
        $region34: #{tpu_custom_call.1} parent=27 // pred_check_branch
          %196 = sbr.rel (%p194) target = $region36
        $region35: #{tpu_custom_call.1} parent=27 // pred_region
          %197 = dma.done %s190, 32
        $region36: #{tpu_custom_call.1} parent=27 // pred_fallthru
          _
        %s198 = sand.u32 %s44, 1
        %s199 = scalar_lea.sflag [#allocation3], %s198
        %s200 = sand.u32 %s44, 1
        %s201 = smul.addr %s200, 8
        %s202 = scalar_lea.vmem [#allocation2], %s201
        %p203 = pneg %p57
        %p204 = pneg %p54
        %s205 = sand.u32 %s72, 1
        %s206 = scalar_lea.sflag [#allocation6], %s205
        %s207 = sand.u32 %s72, 1
        %s208 = smul.addr %s207, 2
        %s209 = scalar_lea.vmem [#allocation5], %s208
        %p210 = pneg %p85
        %p211 = pneg %p82
        %p212 = pneg %p113
        %p213 = pneg %p110
        %s214 = sand.u32 %s100, 1
        %s215 = scalar_lea.sflag [#allocation4], %s214
        %s216 = sand.u32 %s100, 1
        %s217 = scalar_lea.vmem [#allocation7], %s216
        %s218 = scalar_lea.vmem %s184, 2 [#allocation2]
        %v219 = vld [vmem:[%s218] sm:$0x3]
        %v220 = vld [vmem:[%s184] sm:$0x3]
        %vm221 = vcmp.gt.f32.partialorder %v219, %v220
        %s222 = scalar_lea.vmem %s184, 4 [#allocation2]
        %v223 = vld [vmem:[%s222] sm:$0x3]
        %vm224 = vcmp.ge.f32.partialorder %v219, %v223
        %vm225 = vmand %vm221, %vm224
        %s226 = scalar_lea.vmem %s184, 6 [#allocation2]
        %v227 = vld [vmem:[%s226] sm:$0x3]
        %vm228 = vcmp.ge.f32.partialorder %v219, %v227
        %vm229 = vmand %vm225, %vm228
        %v230 = vld [vmem:[%s193] sm:$0x3]
        %vm231 = vcmp.eq.s32.totalorder %v230, 1
        %vm232 = vmand %vm229, %vm231
        %v233 = vsel %vm232, 1, 0
        %vm234 = vcmask 1041408
        %v235 = vsel %vm234, %v233, 0
        %v236 = vand.u32 %v235, 65535
        %v237 = vshrl.u32 %v235, 16
        %v238 = vcvt.s32.f32 %v236
        %v239 = vcvt.s32.f32 %v237
        %240 = vadd.xlane.f32.xlu0 %v238
        %v241 = vpop.xlane.xlu0 %240
        %242 = vadd.xlane.f32.xlu0 %v239
        %v243 = vpop.xlane.xlu0 %242
        %v244 = vcvt.f32.s32 %v241
        %v245 = vcvt.f32.s32 %v243
        %v246 = vshll.u32 %v245, 16
        %v247 = vadd.s32 %v246, %v244
        %v248 = vrot.slane %v247, 4
        %v249 = vadd.s32 %v247, %v248
        %v250 = vrot.slane %v249, 2
        %v251 = vadd.s32 %v249, %v250
        %v252 = vrot.slane %v251, 1
        %v253 = vadd.s32 %v251, %v252
        %s254 = vtos %v253
        %v255 = vsel %vm229, 1, 0
        %v256 = vsel %vm234, %v255, 0
        %v257 = vand.u32 %v256, 65535
        %v258 = vshrl.u32 %v256, 16
        %v259 = vcvt.s32.f32 %v257
        %v260 = vcvt.s32.f32 %v258
        %261 = vadd.xlane.f32.xlu0 %v259
        %v262 = vpop.xlane.xlu0 %261
        %263 = vadd.xlane.f32.xlu0 %v260
        %v264 = vpop.xlane.xlu0 %263
        %v265 = vcvt.f32.s32 %v262
        %v266 = vcvt.f32.s32 %v264
        %v267 = vshll.u32 %v266, 16
        %v268 = vadd.s32 %v267, %v265
        %v269 = vrot.slane %v268, 4
        %v270 = vadd.s32 %v268, %v269
        %v271 = vrot.slane %v270, 2
        %v272 = vadd.s32 %v270, %v271
        %v273 = vrot.slane %v272, 1
        %v274 = vadd.s32 %v272, %v273
        %s275 = vtos %v274
        %v276 = vsel %vm231, 1, 0
        %v277 = vsel %vm234, %v276, 0
        %v278 = vand.u32 %v277, 65535
        %v279 = vshrl.u32 %v277, 16
        %v280 = vcvt.s32.f32 %v278
        %v281 = vcvt.s32.f32 %v279
        %282 = vadd.xlane.f32.xlu0 %v280
        %v283 = vpop.xlane.xlu0 %282
        %284 = vadd.xlane.f32.xlu0 %v281
        %v285 = vpop.xlane.xlu0 %284
        %v286 = vcvt.f32.s32 %v283
        %v287 = vcvt.f32.s32 %v285
        %v288 = vshll.u32 %v287, 16
        %v289 = vadd.s32 %v288, %v286
        %v290 = vrot.slane %v289, 4
        %v291 = vadd.s32 %v289, %v290
        %v292 = vrot.slane %v291, 2
        %v293 = vadd.s32 %v291, %v292
        %v294 = vrot.slane %v293, 1
        %v295 = vadd.s32 %v293, %v294
        %s296 = vtos %v295
        %v297 = vlaneseq
        %v298 = vand.u32 %v297, 127
        %vm299 = vcmp.eq.s32.totalorder %v298, 0
        %vm300 = vcmp.eq.s32.totalorder %v298, 1
        %vm301 = vcmp.eq.s32.totalorder %v298, 2
        %v302 = vstv %s296
        %v303 = vsel %vm301, %v302, 0
        %v304 = vstv %s275
        %v305 = vsel %vm300, %v304, %v303
        %v306 = vstv %s254
        %v307 = vsel %vm299, %v306, %v305
        %308 = vst [vmem:[%s217] sm:$0x1] %v307
        %s309 = sand.u32 %s100, 1
        %s310 = scalar_lea.sflag [#allocation4], %s309
        %s311 = sand.u32 %s100, 1
        %s312 = scalar_lea.vmem [#allocation7], %s311
        // Predicated region
        $region37: #{tpu_custom_call.1} parent=27 // pred_check
          %p313 = pneg %p110
        $region38: #{tpu_custom_call.1} parent=27 // pred_check_branch
          %315 = sbr.rel (%p313) target = $region40
        $region39: #{tpu_custom_call.1} parent=27 // pred_region
          %s317 = ssub.s32 16, 16
          %318 = vsyncadd %s310, %s317
          %s319 = sadd.s32 %s27, %s26
          %s320 = smul.addr %s319, 16
          %s321 = scalar_lea.hbm %s2, %s320
          %s323 = sshll.u32 %s312, 4
          %s324 = int_to_ptr.vmem [resolvable:$true] %s323
          %326 = dma.vmem_to_hbm [thread:$0]  %s324, 16, %s321, %s310
        $region40: #{tpu_custom_call.1} parent=27 // pred_fallthru
          _
      $region28: #{tpu_custom_call.1} parent=5 // pred_fallthru
        _
      %p327 = scmp.le.s32.totalorder 2, %s17
      // Predicated region
      $region41: #{tpu_custom_call.1} parent=5 // pred_check
        %p328 = pneg %p327
      $region42: #{tpu_custom_call.1} parent=5 // pred_check_branch
        %330 = sbr.rel (%p328) target = $region44
      $region43: #{tpu_custom_call.1} parent=5 // pred_region
        %s331 = ssub.s32 %s17, 2
        // Predicated region
        $region45: #{tpu_custom_call.1} parent=43 // pred_check
          %p332 = pneg %p116
        $region46: #{tpu_custom_call.1} parent=43 // pred_check_branch
          %334 = sbr.rel (%p332) target = $region48
        $region47: #{tpu_custom_call.1} parent=43 // pred_region
          %s335 = sand.u32 %s101, 1
          %s336 = scalar_lea.sflag [#allocation4], %s335
          %s337 = sand.u32 %s101, 1
          %s338 = scalar_lea.vmem [#allocation7], %s337
          %339 = dma.done %s336, 16
        $region48: #{tpu_custom_call.1} parent=43 // pred_fallthru
          _
      $region44: #{tpu_custom_call.1} parent=5 // pred_fallthru
        _
    $region6: #{tpu_custom_call.1} parent=1 // loop_footer
      %s21 = sadd.s32 1, %s17
    $region7: #{tpu_custom_call.1} parent=1 // loop_footer_branch
      %16 = sbr.rel target = $region3
    $region8: #{tpu_custom_call.1} parent=1 // loop_exit
      _
    %340 = vsyncpa [#allocation3], 1
    %s341 = scalar_lea.sflag [#allocation3], 1
    %342 = vsyncpa %s341, 1
    %343 = vsyncpa [#allocation6], 1
    %s344 = scalar_lea.sflag [#allocation6], 1
    %345 = vsyncpa %s344, 1
    %346 = vsyncpa [#allocation4], 1
    %s347 = scalar_lea.sflag [#allocation4], 1
    %348 = vsyncpa %s347, 1

</llo_original>
